<compile_context>
chip_gen: v6e
topology: v6e:2x2x1
jax: 0.10.0
libtpu: 0.0.40
codegen_flags: <defaults>
</compile_context>

<pallas_src>
import jax
import jax.numpy as jnp
from jax.experimental import pallas as pl
from jax.experimental.pallas import tpu as pltpu


def _round_up(n, m):
    return ((n + m - 1) // m) * m


def _num_tensorcores():
    """Best-effort (trace-time) count of TensorCores driven by one kernel launch."""
    try:
        dev = jax.devices()[0]
    except Exception:
        return 1
    n = getattr(dev, "num_cores", None)
    try:
        if n is not None and int(n) >= 1:
            return int(n)
    except (TypeError, ValueError):
        pass
    kind = str(getattr(dev, "device_kind", "")).lower()
    # v7x and v4/v5p megacore expose two TensorCores behind one device.
    if any(tag in kind for tag in ("v7", "v5p", "v4")):
        return 2
    return 1


def _choose_tiling(batch, num_cores, tb_cap):
    """Pick (tile_batch, n_tiles): every tile start in-bounds, n_tiles*tile >= batch."""
    if batch < 256:
        # Single block equal to the full (possibly unaligned) batch. block_shape ==
        # full array dims is always a legal BlockSpec, and a second TensorCore would
        # not pay off at this size.
        return batch, 1
    # Per-tile cap: ~2K samples/tile on 2-TC parts (both cores get balanced tiles),
    # ~4K on single-TC parts (fewer grid steps, same VMEM ballpark).
    max_tile = tb_cap if num_cores >= 2 else 2 * tb_cap
    n_target = pl.cdiv(batch, max_tile)
    if num_cores >= 2:
        n_target = _round_up(n_target, num_cores)     # balanced across TensorCores
    tile = _round_up(pl.cdiv(batch, n_target), 128)    # lane-dense 128-aligned tiles
    n_tiles = pl.cdiv(batch, tile)                     # guarantees in-bounds tile starts
    return tile, n_tiles


def _chess_ai_kernel(x_ref, w1_ref, b1_ref, w2_ref, b2_ref, w3_ref, b3_ref, o_ref):
    # x_ref: (tb, 64) f32, natural batch-major layout straight from HBM (no pre-pass).
    # Cast to bf16 on the VPU; the transpose is consumed by the first matmul so the
    # whole pipeline runs with features on sublanes and batch on lanes.
    x_bf = x_ref[...].astype(jnp.bfloat16)                          # (tb, 64) bf16

    # fc1: (128, 64) @ (64, tb) -> (128, tb); bf16 MXU inputs, f32 accumulation, ReLU.
    h1 = jnp.dot(w1_ref[...], x_bf.T,
                 preferred_element_type=jnp.float32) + b1_ref[...]
    h1 = jnp.maximum(h1, 0.0)

    # fc2: (64, 128) @ (128, tb) -> (64, tb); f32 accumulation, ReLU.
    h2 = jnp.dot(w2_ref[...], h1.astype(jnp.bfloat16),
                 preferred_element_type=jnp.float32) + b2_ref[...]
    h2 = jnp.maximum(h2, 0.0)

    # fc3 (output width 1): VPU multiply + cross-sublane (XLU) sum instead of a
    # degenerate N=1 MXU matmul; result is a lane-dense (1, tb) row. b3 is SMEM scalar.
    z = jnp.sum(h2 * w3_ref[...], axis=0, keepdims=True) + b3_ref[0]   # (1, tb) f32

    # sigmoid(z) = 1 / (1 + exp(-z)); exp + approx reciprocal both run on the EUP.
    o_ref[...] = pl.reciprocal(1.0 + jnp.exp(-z), approx=True)


def chess_ai_forward(x, params, *, tb_cap=2048, num_cores=None):
    """x: (B, 64) float32 board features. params in native torch layout
    (W: (out, in), b: (out,)). Returns sigmoid scores of shape (B, 1) float32."""
    w1, b1, w2, b2, w3, b3 = params
    B, d_in = x.shape
    assert d_in == 64
    h1_dim = w1.shape[0]   # 128
    h2_dim = w2.shape[0]   # 64

    if num_cores is None:
        num_cores = _num_tensorcores()
    tb_eff, n_tiles = _choose_tiling(B, num_cores, tb_cap)
    out_cols = n_tiles * tb_eff

    # Weight/bias plumbing: tiny (~50 KB) one-time casts/reshapes; resident in VMEM
    # across all grid steps via constant index maps. x itself is passed untouched
    # (no pad, no transpose, no cast in HBM).
    w1_bf = w1.astype(jnp.bfloat16)                        # (128, 64)
    w2_bf = w2.astype(jnp.bfloat16)                        # (64, 128)
    b1_col = b1.reshape(h1_dim, 1).astype(jnp.float32)     # (128, 1)
    b2_col = b2.reshape(h2_dim, 1).astype(jnp.float32)     # (64, 1)
    w3_col = w3.reshape(h2_dim, 1).astype(jnp.float32)     # (64, 1)
    b3_s = b3.reshape(1).astype(jnp.float32)               # (1,) scalar -> SMEM

    # TODO(synk): optional int8 (v5e/v6e) / fp8 (v7x) MXU path for x/W1/W2 would ~2x
    # the matmul rate and halve x HBM bytes, but needs a chess-eval accuracy sign-off.
    # Likewise, accepting bf16 boards directly from the producer would halve x reads.

    out = pl.pallas_call(
        _chess_ai_kernel,
        out_shape=jax.ShapeDtypeStruct((1, out_cols), jnp.float32),
        grid_spec=pltpu.PrefetchScalarGridSpec(
            num_scalar_prefetch=0,
            grid=(n_tiles,),
            in_specs=[
                pl.BlockSpec((tb_eff, d_in), lambda i: (i, 0)),     # x tile, natural layout
                pl.BlockSpec((h1_dim, d_in), lambda i: (0, 0)),     # W1 (resident)
                pl.BlockSpec((h1_dim, 1),    lambda i: (0, 0)),     # b1 column
                pl.BlockSpec((h2_dim, h1_dim), lambda i: (0, 0)),   # W2 (resident)
                pl.BlockSpec((h2_dim, 1),    lambda i: (0, 0)),     # b2 column
                pl.BlockSpec((h2_dim, 1),    lambda i: (0, 0)),     # w3 column (VPU path)
                pl.BlockSpec(memory_space=pltpu.MemorySpace.SMEM),  # b3 scalar
            ],
            out_specs=pl.BlockSpec((1, tb_eff), lambda i: (0, i)),  # lane-dense row
        ),
        compiler_params=pltpu.CompilerParams(
            dimension_semantics=("parallel",),
            # Per-step footprint is ~3-7 MiB at tile=2-4K (x f32 block double-buffered
            # plus f32/bf16 intermediates and resident weights); 32 MiB is safe on
            # v5e/v6e (128 MiB physical VMEM) and on v7x (64 MiB physical VMEM).
            vmem_limit_bytes=32 * 1024 * 1024,
        ),
    )(x, w1_bf, b1_col, w2_bf, b2_col, w3_col, b3_s)

    # Lanes are samples in order; ragged-tail junk columns (>= B) are dropped here.
    return out[0, :B].reshape(B, 1)


def init_params(key):
    """Deterministic synthetic params in native torch.nn.Linear layout:
    W is (out_features, in_features), b is (out_features,)."""
    ks = jax.random.split(key, 6)

    def linear(kw, kb, fan_in, fan_out):
        bound = 1.0 / jnp.sqrt(fan_in)
        w = jax.random.uniform(kw, (fan_out, fan_in), jnp.float32, -bound, bound)
        b = jax.random.uniform(kb, (fan_out,), jnp.float32, -bound, bound)
        return w, b

    w1, b1 = linear(ks[0], ks[1], 64, 128)
    w2, b2 = linear(ks[2], ks[3], 128, 64)
    w3, b3 = linear(ks[4], ks[5], 64, 1)
    return (w1, b1, w2, b2, w3, b3)


def _reference(x, params):
    """Pure-JAX f32 reference matching the PyTorch forward."""
    w1, b1, w2, b2, w3, b3 = params
    h1 = jnp.maximum(x @ w1.T + b1, 0.0)
    h2 = jnp.maximum(h1 @ w2.T + b2, 0.0)
    return jax.nn.sigmoid(h2 @ w3.T + b3)


if __name__ == "__main__":
    key = jax.random.PRNGKey(0)
    kx1, kx2, kp = jax.random.split(key, 3)
    params = init_params(kp)

    fwd = jax.jit(lambda xx: chess_ai_forward(xx, params))

    # Small ragged batch: single block equal to the (unaligned) batch, no padding.
    B1 = 12
    x1 = jax.random.normal(kx1, (B1, 64), dtype=jnp.float32)
    out1 = jax.block_until_ready(fwd(x1))
    ref1 = _reference(x1, params)
    assert out1.shape == (B1, 1)
    assert bool(jnp.all(jnp.isfinite(out1)))
    # bf16 weights/inputs (f32 accumulation) + approx reciprocal vs f32 reference.
    assert jnp.allclose(out1, ref1, atol=2e-2, rtol=0.0), float(jnp.max(jnp.abs(out1 - ref1)))

    # Larger ragged batch: exercises 128-aligned tiles with a ragged boundary tile
    # (and the balanced two-TensorCore split on v7x) without any pad/transpose pre-pass.
    B2 = 300
    x2 = jax.random.normal(kx2, (B2, 64), dtype=jnp.float32)
    out2 = jax.block_until_ready(fwd(x2))
    ref2 = _reference(x2, params)
    assert out2.shape == (B2, 1)
    assert bool(jnp.all(jnp.isfinite(out2)))
    assert jnp.allclose(out2, ref2, atol=2e-2, rtol=0.0), float(jnp.max(jnp.abs(out2 - ref2)))

    print("KERNEL_OK")
</pallas_src>

<mosaic_0001>
module attributes {stable_mosaic.version = 11 : i64} {
  func.func @_chess_ai_kernel(%arg0: i32, %arg1: memref<12x64xf32, #tpu.memory_space<vmem>>, %arg2: memref<128x64xbf16, #tpu.memory_space<vmem>>, %arg3: memref<128x1xf32, #tpu.memory_space<vmem>>, %arg4: memref<64x128xbf16, #tpu.memory_space<vmem>>, %arg5: memref<64x1xf32, #tpu.memory_space<vmem>>, %arg6: memref<64x1xf32, #tpu.memory_space<vmem>>, %arg7: memref<1xf32, #tpu.memory_space<smem>>, %arg8: memref<1x12xf32, #tpu.memory_space<vmem>>) attributes {dimension_semantics = [#tpu.dimension_semantics<parallel>], iteration_bounds = array<i64: 1>, scalar_prefetch = 0 : i64, scratch_operands = 0 : i64, tpu.core_type = #tpu.core_type<tc>, window_params = [{transform_indices = @transform_0, window_bounds = array<i64: 12, 64>}, {pipeline_mode = #tpu.pipeline_mode<synchronous>, transform_indices = @transform_1, window_bounds = array<i64: 128, 64>}, {pipeline_mode = #tpu.pipeline_mode<synchronous>, transform_indices = @transform_2, window_bounds = array<i64: 128, 1>}, {pipeline_mode = #tpu.pipeline_mode<synchronous>, transform_indices = @transform_3, window_bounds = array<i64: 64, 128>}, {pipeline_mode = #tpu.pipeline_mode<synchronous>, transform_indices = @transform_4, window_bounds = array<i64: 64, 1>}, {pipeline_mode = #tpu.pipeline_mode<synchronous>, transform_indices = @transform_5, window_bounds = array<i64: 64, 1>}, {transform_indices = @transform_6, window_bounds = array<i64: 1>}, {transform_indices = @transform_7, window_bounds = array<i64: 1, 12>}]} {
    %c0 = arith.constant 0 : index
    %c0_0 = arith.constant 0 : index
    %0 = vector.load %arg1[%c0, %c0_0] : memref<12x64xf32, #tpu.memory_space<vmem>>, vector<12x64xf32>
    %1 = arith.truncf %0 : vector<12x64xf32> to vector<12x64xbf16>
    %c0_1 = arith.constant 0 : index
    %c0_2 = arith.constant 0 : index
    %2 = vector.load %arg2[%c0_1, %c0_2] : memref<128x64xbf16, #tpu.memory_space<vmem>>, vector<128x64xbf16>
    %3 = tpu.transpose %1, [1, 0] : vector<12x64xbf16> -> vector<64x12xbf16>
    %cst = arith.constant dense<0.000000e+00> : vector<128x12xf32>
    %4 = tpu.matmul %2, %3, %cst {dimension_numbers = #tpu.dot_dimension_numbers<[1], [0], [0], [1], [0, 0, 1, 1], [], []>} : vector<128x64xbf16>, vector<64x12xbf16>, vector<128x12xf32> -> vector<128x12xf32>
    %c0_3 = arith.constant 0 : index
    %c0_4 = arith.constant 0 : index
    %5 = vector.load %arg3[%c0_3, %c0_4] : memref<128x1xf32, #tpu.memory_space<vmem>>, vector<128x1xf32>
    %6 = vector.broadcast %5 : vector<128x1xf32> to vector<128x12xf32>
    %7 = arith.addf %4, %6 : vector<128x12xf32>
    %cst_5 = arith.constant 0.000000e+00 : f32
    %8 = vector.broadcast %cst_5 : f32 to vector<128x12xf32>
    %9 = arith.maximumf %7, %8 : vector<128x12xf32>
    %c0_6 = arith.constant 0 : index
    %c0_7 = arith.constant 0 : index
    %10 = vector.load %arg4[%c0_6, %c0_7] : memref<64x128xbf16, #tpu.memory_space<vmem>>, vector<64x128xbf16>
    %11 = arith.truncf %9 : vector<128x12xf32> to vector<128x12xbf16>
    %cst_8 = arith.constant dense<0.000000e+00> : vector<64x12xf32>
    %12 = tpu.matmul %10, %11, %cst_8 {dimension_numbers = #tpu.dot_dimension_numbers<[1], [0], [0], [1], [0, 0, 1, 1], [], []>} : vector<64x128xbf16>, vector<128x12xbf16>, vector<64x12xf32> -> vector<64x12xf32>
    %c0_9 = arith.constant 0 : index
    %c0_10 = arith.constant 0 : index
    %13 = vector.load %arg5[%c0_9, %c0_10] : memref<64x1xf32, #tpu.memory_space<vmem>>, vector<64x1xf32>
    %14 = vector.broadcast %13 : vector<64x1xf32> to vector<64x12xf32>
    %15 = arith.addf %12, %14 : vector<64x12xf32>
    %cst_11 = arith.constant 0.000000e+00 : f32
    %16 = vector.broadcast %cst_11 : f32 to vector<64x12xf32>
    %17 = arith.maximumf %15, %16 : vector<64x12xf32>
    %c0_12 = arith.constant 0 : index
    %c0_13 = arith.constant 0 : index
    %18 = vector.load %arg6[%c0_12, %c0_13] : memref<64x1xf32, #tpu.memory_space<vmem>>, vector<64x1xf32>
    %19 = vector.broadcast %18 : vector<64x1xf32> to vector<64x12xf32>
    %20 = arith.mulf %17, %19 : vector<64x12xf32>
    %cst_14 = arith.constant dense<0.000000e+00> : vector<12xf32>
    %21 = vector.multi_reduction <add>, %20, %cst_14 [0] : vector<64x12xf32> to vector<12xf32>
    %22 = vector.shape_cast %21 : vector<12xf32> to vector<1x12xf32>
    %c0_15 = arith.constant 0 : index
    %23 = memref.load %arg7[%c0_15] : memref<1xf32, #tpu.memory_space<smem>>
    %24 = vector.broadcast %23 : f32 to vector<1x12xf32>
    %25 = arith.addf %22, %24 : vector<1x12xf32>
    %cst_16 = arith.constant 0.000000e+00 : f32
    %26 = vector.broadcast %cst_16 : f32 to vector<1x12xf32>
    %27 = arith.subf %26, %25 : vector<1x12xf32>
    %28 = math.exp %27 : vector<1x12xf32>
    %cst_17 = arith.constant 1.000000e+00 : f32
    %29 = vector.broadcast %cst_17 : f32 to vector<1x12xf32>
    %30 = arith.addf %29, %28 : vector<1x12xf32>
    %31 = tpu.reciprocal %30 {approx = true} : vector<1x12xf32> -> vector<1x12xf32>
    %c0_18 = arith.constant 0 : index
    %c0_19 = arith.constant 0 : index
    %32 = vector.load %arg8[%c0_18, %c0_19] : memref<1x12xf32, #tpu.memory_space<vmem>>, vector<1x12xf32>
    tpu.vector_store %arg8[%c0_18, %c0_19], %31 {strides = array<i32>} : memref<1x12xf32, #tpu.memory_space<vmem>>, vector<1x12xf32>,
    return
  }
  func.func @transform_0(%arg0: i32) -> (i32, i32) {
    %c0_i32 = arith.constant 0 : i32
    %c0_i32_0 = arith.constant 0 : i32
    return %arg0, %c0_i32 : i32, i32
  }
  func.func @transform_1(%arg0: i32) -> (i32, i32) {
    %c0_i32 = arith.constant 0 : i32
    %c0_i32_0 = arith.constant 0 : i32
    %c0_i32_1 = arith.constant 0 : i32
    return %c0_i32, %c0_i32_0 : i32, i32
  }
  func.func @transform_2(%arg0: i32) -> (i32, i32) {
    %c0_i32 = arith.constant 0 : i32
    %c0_i32_0 = arith.constant 0 : i32
    %c0_i32_1 = arith.constant 0 : i32
    return %c0_i32, %c0_i32_0 : i32, i32
  }
  func.func @transform_3(%arg0: i32) -> (i32, i32) {
    %c0_i32 = arith.constant 0 : i32
    %c0_i32_0 = arith.constant 0 : i32
    %c0_i32_1 = arith.constant 0 : i32
    return %c0_i32, %c0_i32_0 : i32, i32
  }
  func.func @transform_4(%arg0: i32) -> (i32, i32) {
    %c0_i32 = arith.constant 0 : i32
    %c0_i32_0 = arith.constant 0 : i32
    %c0_i32_1 = arith.constant 0 : i32
    return %c0_i32, %c0_i32_0 : i32, i32
  }
  func.func @transform_5(%arg0: i32) -> (i32, i32) {
    %c0_i32 = arith.constant 0 : i32
    %c0_i32_0 = arith.constant 0 : i32
    %c0_i32_1 = arith.constant 0 : i32
    return %c0_i32, %c0_i32_0 : i32, i32
  }
  func.func @transform_6(%arg0: i32) -> i32 {
    %c0_i32 = arith.constant 0 : i32
    %c0_i32_0 = arith.constant 0 : i32
    return %c0_i32 : i32
  }
  func.func @transform_7(%arg0: i32) -> (i32, i32) {
    %c0_i32 = arith.constant 0 : i32
    %c0_i32_0 = arith.constant 0 : i32
    return %c0_i32, %arg0 : i32, i32
  }
}

</mosaic_0001>

<llo_original>
// kernel: _lambda_.1
$region0: #{_lambda_.1}
  #allocation0 [shape = 'u32[]', space=smem, size = 0x4, offset = 0x4, fixed_abs, tag = 'smem constant byte address 0x4 - core index']
  #allocation1 [shape = 'u32[144,128]{1,0:T(1,128)}', space=vmem, size = 0x12000, scoped, tag = 'internal scratch']
  #allocation2 [shape = 'f32[1]{0:T(128)S(6)}', space=smem, size = 0x200, scoped, tag = 'scoped memory for _lambda_.1']
  %s0 = inlined_call_operand.hbm [shape: f32[12,64], index: 0, kind: input, shape index: {}]
  %s1 = inlined_call_operand.hbm [shape: bf16[128,64], index: 1, kind: input, shape index: {}]
  %s2 = inlined_call_operand.hbm [shape: f32[128,1], index: 2, kind: input, shape index: {}]
  %s3 = inlined_call_operand.hbm [shape: bf16[64,128], index: 3, kind: input, shape index: {}]
  %s4 = inlined_call_operand.hbm [shape: f32[64,1], index: 4, kind: input, shape index: {}]
  %s5 = inlined_call_operand.hbm [shape: f32[64,1], index: 5, kind: input, shape index: {}]
  %s6 = inlined_call_operand.<no memory space> [shape: f32[1], index: 6, kind: input, shape index: {}]
  %s7 = inlined_call_operand.hbm [shape: f32[1,12], index: 7, kind: output, shape index: {}]
  %s8 = sld [smem:[#allocation0]]
  $region62: #{_lambda_.1} parent=0
    _
  %s10 = ssub.s32 1, %s8
  %s11 = scalar_select 0, %s10, %s8
  %12 = sst [smem:[#allocation2]] %s6
  $region1: #{_lambda_.1} parent=0
    #allocation3 [shape = 'u8[8192]{0}', space=vmem, size = 0x2000, scoped, tag = 'input window, operand 0, single buffered']
    #allocation4 [shape = 's32[1]{0}', space=sflag, size = 0x4, scoped, tag = 'scoped memory for _lambda_.1']
    #allocation5 [shape = 's32[1]{0}', space=sflag, size = 0x4, scoped, tag = 'scoped memory for _lambda_.1']
    #allocation6 [shape = 'u8[32768]{0}', space=vmem, size = 0x8000, scoped, tag = 'input window, operand 1, single buffered']
    #allocation7 [shape = 's32[1]{0}', space=sflag, size = 0x4, scoped, tag = 'scoped memory for _lambda_.1']
    #allocation8 [shape = 'u8[65536]{0}', space=vmem, size = 0x10000, scoped, tag = 'input window, operand 2, single buffered']
    #allocation9 [shape = 'u8[16384]{0}', space=vmem, size = 0x4000, scoped, tag = 'input window, operand 3, single buffered']
    #allocation10 [shape = 's32[1]{0}', space=sflag, size = 0x4, scoped, tag = 'scoped memory for _lambda_.1']
    #allocation11 [shape = 'u8[32768]{0}', space=vmem, size = 0x8000, scoped, tag = 'input window, operand 4, single buffered']
    #allocation12 [shape = 'u8[32768]{0}', space=vmem, size = 0x8000, scoped, tag = 'input window, operand 5, single buffered']
    #allocation13 [shape = 's32[1]{0}', space=sflag, size = 0x4, scoped, tag = 'scoped memory for _lambda_.1']
    #allocation14 [shape = 'u8[512]{0}', space=vmem, size = 0x400, scoped, tag = 'output window, operand 0, single buffered']
    %13 = vsyncpa [#allocation4], 0
    %14 = vsyncpa [#allocation7], 0
    %15 = vsyncpa [#allocation10], 0
    %16 = vsyncpa [#allocation13], 0
    %17 = vsyncpa [#allocation5], 0
    // Predicated region
    $region2: #{_lambda_.1} parent=1 // pred_check
      _
    $region3: #{_lambda_.1} parent=1 // pred_check_branch
      %19 = sbr.rel (0) target = $region5
    $region4: #{_lambda_.1} parent=1 // pred_region
      %s21 = ssub.s32 256, 256
      %22 = vsyncadd [#allocation4], %s21
      %s23 = sshll.u32 [#allocation3], 4
      %s24 = int_to_ptr.vmem [resolvable:$true] %s23
      %29 = dma.hbm_to_vmem [thread:$0]  %s0, 256, %s24, [#allocation4], 128, 128, 8
    $region5: #{_lambda_.1} parent=1 // pred_fallthru
      _
    // Predicated region
    $region6: #{_lambda_.1} parent=1 // pred_check
      _
    $region7: #{_lambda_.1} parent=1 // pred_check_branch
      %31 = sbr.rel (0) target = $region9
    $region8: #{_lambda_.1} parent=1 // pred_region
      %s33 = ssub.s32 1024, 1024
      %34 = vsyncadd [#allocation7], %s33
      %s35 = sshll.u32 [#allocation6], 4
      %s36 = int_to_ptr.vmem [resolvable:$true] %s35
      %41 = dma.hbm_to_vmem [thread:$0]  %s1, 1024, %s36, [#allocation7], 64, 64, 4
    $region9: #{_lambda_.1} parent=1 // pred_fallthru
      _
    // Predicated region
    $region10: #{_lambda_.1} parent=1 // pred_check
      _
    $region11: #{_lambda_.1} parent=1 // pred_check_branch
      %43 = sbr.rel (0) target = $region13
    $region12: #{_lambda_.1} parent=1 // pred_region
      %s45 = ssub.s32 2048, 2048
      %46 = vsyncadd [#allocation7], %s45
      %s47 = sshll.u32 [#allocation8], 4
      %s48 = int_to_ptr.vmem [resolvable:$true] %s47
      %53 = dma.hbm_to_vmem [thread:$0]  %s2, 2048, %s48, [#allocation7], 128, 128, 8
    $region13: #{_lambda_.1} parent=1 // pred_fallthru
      _
    // Predicated region
    $region14: #{_lambda_.1} parent=1 // pred_check
      _
    $region15: #{_lambda_.1} parent=1 // pred_check_branch
      %55 = sbr.rel (0) target = $region17
    $region16: #{_lambda_.1} parent=1 // pred_region
      %s57 = ssub.s32 512, 512
      %58 = vsyncadd [#allocation10], %s57
      %s59 = sshll.u32 [#allocation9], 4
      %s60 = int_to_ptr.vmem [resolvable:$true] %s59
      %65 = dma.hbm_to_vmem [thread:$0]  %s3, 512, %s60, [#allocation10], 64, 64, 4
    $region17: #{_lambda_.1} parent=1 // pred_fallthru
      _
    // Predicated region
    $region18: #{_lambda_.1} parent=1 // pred_check
      _
    $region19: #{_lambda_.1} parent=1 // pred_check_branch
      %67 = sbr.rel (0) target = $region21
    $region20: #{_lambda_.1} parent=1 // pred_region
      %s69 = ssub.s32 1024, 1024
      %70 = vsyncadd [#allocation10], %s69
      %s71 = sshll.u32 [#allocation11], 4
      %s72 = int_to_ptr.vmem [resolvable:$true] %s71
      %77 = dma.hbm_to_vmem [thread:$0]  %s4, 1024, %s72, [#allocation10], 128, 128, 8
    $region21: #{_lambda_.1} parent=1 // pred_fallthru
      _
    // Predicated region
    $region22: #{_lambda_.1} parent=1 // pred_check
      _
    $region23: #{_lambda_.1} parent=1 // pred_check_branch
      %79 = sbr.rel (0) target = $region25
    $region24: #{_lambda_.1} parent=1 // pred_region
      %s81 = ssub.s32 1024, 1024
      %82 = vsyncadd [#allocation13], %s81
      %s83 = sshll.u32 [#allocation12], 4
      %s84 = int_to_ptr.vmem [resolvable:$true] %s83
      %89 = dma.hbm_to_vmem [thread:$0]  %s5, 1024, %s84, [#allocation13], 128, 128, 8
    $region25: #{_lambda_.1} parent=1 // pred_fallthru
      _
    // Predicated region
    $region26: #{_lambda_.1} parent=1 // pred_check
      _
    $region27: #{_lambda_.1} parent=1 // pred_check_branch
      %91 = sbr.rel (0) target = $region29
    $region28: #{_lambda_.1} parent=1 // pred_region
      _
    $region29: #{_lambda_.1} parent=1 // pred_fallthru
      _
    // Predicated region
    $region30: #{_lambda_.1} parent=1 // pred_check
      _
    $region31: #{_lambda_.1} parent=1 // pred_check_branch
      %93 = sbr.rel (0) target = $region33
    $region32: #{_lambda_.1} parent=1 // pred_region
      %94 = dma.done [#allocation4], 256
    $region33: #{_lambda_.1} parent=1 // pred_fallthru
      _
    // Predicated region
    $region34: #{_lambda_.1} parent=1 // pred_check
      _
    $region35: #{_lambda_.1} parent=1 // pred_check_branch
      %96 = sbr.rel (0) target = $region37
    $region36: #{_lambda_.1} parent=1 // pred_region
      %97 = dma.done [#allocation7], 1024
    $region37: #{_lambda_.1} parent=1 // pred_fallthru
      _
    // Predicated region
    $region38: #{_lambda_.1} parent=1 // pred_check
      _
    $region39: #{_lambda_.1} parent=1 // pred_check_branch
      %99 = sbr.rel (0) target = $region41
    $region40: #{_lambda_.1} parent=1 // pred_region
      %100 = dma.done [#allocation7], 2048
    $region41: #{_lambda_.1} parent=1 // pred_fallthru
      _
    // Predicated region
    $region42: #{_lambda_.1} parent=1 // pred_check
      _
    $region43: #{_lambda_.1} parent=1 // pred_check_branch
      %102 = sbr.rel (0) target = $region45
    $region44: #{_lambda_.1} parent=1 // pred_region
      %103 = dma.done [#allocation10], 512
    $region45: #{_lambda_.1} parent=1 // pred_fallthru
      _
    // Predicated region
    $region46: #{_lambda_.1} parent=1 // pred_check
      _
    $region47: #{_lambda_.1} parent=1 // pred_check_branch
      %105 = sbr.rel (0) target = $region49
    $region48: #{_lambda_.1} parent=1 // pred_region
      %106 = dma.done [#allocation10], 1024
    $region49: #{_lambda_.1} parent=1 // pred_fallthru
      _
    // Predicated region
    $region50: #{_lambda_.1} parent=1 // pred_check
      _
    $region51: #{_lambda_.1} parent=1 // pred_check_branch
      %108 = sbr.rel (0) target = $region53
    $region52: #{_lambda_.1} parent=1 // pred_region
      %109 = dma.done [#allocation13], 1024
    $region53: #{_lambda_.1} parent=1 // pred_fallthru
      _
    %v111 = vld [vmem:[#allocation3] sm:$0xff]
    %v112 = vld [vmem:[#allocation3 + $0x8] sm:$0xf]
    %v113 = vpack.c.bf16 %v112, %v111
    %v114 = vld [vmem:[#allocation6] sm:$0xf]
    %v115 = vld [vmem:[#allocation6 + $0x4] sm:$0xf]
    %v116 = vld [vmem:[#allocation6 + $0x8] sm:$0xf]
    %v117 = vld [vmem:[#allocation6 + $0xc] sm:$0xf]
    %v118 = vld [vmem:[#allocation6 + $0x10] sm:$0xf]
    %v119 = vld [vmem:[#allocation6 + $0x14] sm:$0xf]
    %v120 = vld [vmem:[#allocation6 + $0x18] sm:$0xf]
    %v121 = vld [vmem:[#allocation6 + $0x1c] sm:$0xf]
    %v122 = vld [vmem:[#allocation6 + $0x20] sm:$0xf]
    %v123 = vld [vmem:[#allocation6 + $0x24] sm:$0xf]
    %v124 = vld [vmem:[#allocation6 + $0x28] sm:$0xf]
    %v125 = vld [vmem:[#allocation6 + $0x2c] sm:$0xf]
    %v126 = vld [vmem:[#allocation6 + $0x30] sm:$0xf]
    %v127 = vld [vmem:[#allocation6 + $0x34] sm:$0xf]
    %v128 = vld [vmem:[#allocation6 + $0x38] sm:$0xf]
    %v129 = vld [vmem:[#allocation6 + $0x3c] sm:$0xf]
    %v130 = vld [vmem:[#allocation8] sm:$0xff]
    %v131 = vld [vmem:[#allocation8 + $0x8] sm:$0xff]
    %v132 = vld [vmem:[#allocation8 + $0x10] sm:$0xff]
    %v133 = vld [vmem:[#allocation8 + $0x18] sm:$0xff]
    %v134 = vld [vmem:[#allocation8 + $0x20] sm:$0xff]
    %v135 = vld [vmem:[#allocation8 + $0x28] sm:$0xff]
    %v136 = vld [vmem:[#allocation8 + $0x30] sm:$0xff]
    %v137 = vld [vmem:[#allocation8 + $0x38] sm:$0xff]
    %v138 = vld [vmem:[#allocation8 + $0x40] sm:$0xff]
    %v139 = vld [vmem:[#allocation8 + $0x48] sm:$0xff]
    %v140 = vld [vmem:[#allocation8 + $0x50] sm:$0xff]
    %v141 = vld [vmem:[#allocation8 + $0x58] sm:$0xff]
    %v142 = vld [vmem:[#allocation8 + $0x60] sm:$0xff]
    %v143 = vld [vmem:[#allocation8 + $0x68] sm:$0xff]
    %v144 = vld [vmem:[#allocation8 + $0x70] sm:$0xff]
    %v145 = vld [vmem:[#allocation8 + $0x78] sm:$0xff]
    %147 = vset.pattern.permute.xlu0 0
    %148 = vperm.xlu0 %147, %v130
    %v149 = vpop.permute.xlu0 %148
    %152 = vset.pattern.permute.xlu0 0
    %153 = vperm.xlu0 %152, %v131
    %v154 = vpop.permute.xlu0 %153
    %157 = vset.pattern.permute.xlu0 0
    %158 = vperm.xlu0 %157, %v132
    %v159 = vpop.permute.xlu0 %158
    %162 = vset.pattern.permute.xlu0 0
    %163 = vperm.xlu0 %162, %v133
    %v164 = vpop.permute.xlu0 %163
    %167 = vset.pattern.permute.xlu0 0
    %168 = vperm.xlu0 %167, %v134
    %v169 = vpop.permute.xlu0 %168
    %172 = vset.pattern.permute.xlu0 0
    %173 = vperm.xlu0 %172, %v135
    %v174 = vpop.permute.xlu0 %173
    %177 = vset.pattern.permute.xlu0 0
    %178 = vperm.xlu0 %177, %v136
    %v179 = vpop.permute.xlu0 %178
    %182 = vset.pattern.permute.xlu0 0
    %183 = vperm.xlu0 %182, %v137
    %v184 = vpop.permute.xlu0 %183
    %187 = vset.pattern.permute.xlu0 0
    %188 = vperm.xlu0 %187, %v138
    %v189 = vpop.permute.xlu0 %188
    %192 = vset.pattern.permute.xlu0 0
    %193 = vperm.xlu0 %192, %v139
    %v194 = vpop.permute.xlu0 %193
    %197 = vset.pattern.permute.xlu0 0
    %198 = vperm.xlu0 %197, %v140
    %v199 = vpop.permute.xlu0 %198
    %202 = vset.pattern.permute.xlu0 0
    %203 = vperm.xlu0 %202, %v141
    %v204 = vpop.permute.xlu0 %203
    %207 = vset.pattern.permute.xlu0 0
    %208 = vperm.xlu0 %207, %v142
    %v209 = vpop.permute.xlu0 %208
    %212 = vset.pattern.permute.xlu0 0
    %213 = vperm.xlu0 %212, %v143
    %v214 = vpop.permute.xlu0 %213
    %217 = vset.pattern.permute.xlu0 0
    %218 = vperm.xlu0 %217, %v144
    %v219 = vpop.permute.xlu0 %218
    %222 = vset.pattern.permute.xlu0 0
    %223 = vperm.xlu0 %222, %v145
    %v224 = vpop.permute.xlu0 %223
    %v242 = vunpack.c.l.b16 %v114
    %v243 = vunpack.c.l.b16 %v115
    %v244 = vunpack.c.l.b16 %v116
    %v245 = vunpack.c.l.b16 %v117
    %v246 = vunpack.c.l.b16 %v118
    %v247 = vunpack.c.l.b16 %v119
    %v248 = vunpack.c.l.b16 %v120
    %v249 = vunpack.c.l.b16 %v121
    %v250 = vunpack.c.l.b16 %v122
    %v251 = vunpack.c.l.b16 %v123
    %v252 = vunpack.c.l.b16 %v124
    %v253 = vunpack.c.l.b16 %v125
    %v254 = vunpack.c.l.b16 %v126
    %v255 = vunpack.c.l.b16 %v127
    %v256 = vunpack.c.l.b16 %v128
    %v257 = vunpack.c.l.b16 %v129
    %v258 = vpack.c.b16 %v243, %v242
    %v259 = vpack.c.b16 %v245, %v244
    %v260 = vpack.c.b16 %v247, %v246
    %v261 = vpack.c.b16 %v249, %v248
    %v262 = vpack.c.b16 %v251, %v250
    %v263 = vpack.c.b16 %v253, %v252
    %v264 = vpack.c.b16 %v255, %v254
    %v265 = vpack.c.b16 %v257, %v256
    %vm266 = vcmask 523264
    %v268 = vsel %vm266, %v258, 0
    %v271 = vsel %vm266, %v259, 0
    %v274 = vsel %vm266, %v260, 0
    %v277 = vsel %vm266, %v261, 0
    %v280 = vsel %vm266, %v262, 0
    %v283 = vsel %vm266, %v263, 0
    %v286 = vsel %vm266, %v264, 0
    %v289 = vsel %vm266, %v265, 0
    %v292 = vsel %vm266, %v113, 0
    %294 = vmatprep.subr.bf16.mxu0 0
    %295 = vmatpush1.bf16.xpose.msra.mxu0 0
    %296 = vmatprep.subr.bf16.mxu0 0
    %297 = vmatpush1.bf16.xpose.msra.mxu0 0
    %298 = vmatprep.subr.bf16.mxu0 0
    %299 = vmatpush1.bf16.xpose.msra.mxu0 0
    %300 = vmatprep.subr.bf16.mxu0 0
    %301 = vmatpush1.bf16.xpose.msra.mxu0 0
    %302 = vmatprep.subr.bf16.mxu0 0
    %303 = vmatpush1.bf16.xpose.msra.mxu0 0
    %304 = vmatprep.subr.bf16.mxu0 0
    %305 = vmatpush1.bf16.xpose.msra.mxu0 0
    %306 = vmatprep.subr.bf16.mxu0 0
    %307 = vmatpush1.bf16.xpose.msra.mxu0 0
    %308 = vmatprep.subr.bf16.mxu0 0
    %309 = vmatpush1.bf16.xpose.msra.mxu0 %v292
    %310 = vmatprep.subr.bf16.mxu0 0
    %311 = vmatpush2.bf16.xpose.msra.mxu0 0
    %312 = vmatprep.subr.bf16.mxu0 0
    %313 = vmatpush2.bf16.xpose.msra.mxu0 0
    %314 = vmatprep.subr.bf16.mxu0 0
    %315 = vmatpush2.bf16.xpose.msra.mxu0 0
    %316 = vmatprep.subr.bf16.mxu0 0
    %317 = vmatpush2.bf16.xpose.msra.mxu0 0
    %318 = vmatprep.subr.bf16.mxu0 0
    %319 = vmatpush2.bf16.xpose.msra.mxu0 0
    %320 = vmatprep.subr.bf16.mxu0 0
    %321 = vmatpush2.bf16.xpose.msra.mxu0 0
    %322 = vmatprep.subr.bf16.mxu0 0
    %323 = vmatpush2.bf16.xpose.msra.mxu0 0
    %324 = vmatprep.subr.bf16.mxu0 0
    %325 = vmatpush2.bf16.xpose.msra.mxu0 0
    %326 = vmatprep.mubr.bf16.mxu0 0
    %327 = vmatmul.mubr.bf16.gmra.mxu0 %v268
    %v328 = vpop.f32.mrf.mxu0
    %v329 = vadd.f32 %v149, %v328
    %v330 = vpop.f32.mrf.mxu0
    %v331 = vpop.f32.mrf.mxu0
    %v332 = vadd.f32 %v154, %v331
    %v333 = vpop.f32.mrf.mxu0
    %334 = vmatprep.mubr.bf16.mxu0 0
    %335 = vmatmul.mubr.bf16.gmra.mxu0 %v271
    %v336 = vpop.f32.mrf.mxu0
    %v337 = vadd.f32 %v159, %v336
    %v338 = vpop.f32.mrf.mxu0
    %v339 = vpop.f32.mrf.mxu0
    %v340 = vadd.f32 %v164, %v339
    %v341 = vpop.f32.mrf.mxu0
    %342 = vmatprep.mubr.bf16.mxu0 0
    %343 = vmatmul.mubr.bf16.gmra.mxu0 %v274
    %v344 = vpop.f32.mrf.mxu0
    %v345 = vadd.f32 %v169, %v344
    %v346 = vpop.f32.mrf.mxu0
    %v347 = vpop.f32.mrf.mxu0
    %v348 = vadd.f32 %v174, %v347
    %v349 = vpop.f32.mrf.mxu0
    %350 = vmatprep.mubr.bf16.mxu0 0
    %351 = vmatmul.mubr.bf16.gmra.mxu0 %v277
    %v352 = vpop.f32.mrf.mxu0
    %v353 = vadd.f32 %v179, %v352
    %v354 = vpop.f32.mrf.mxu0
    %v355 = vpop.f32.mrf.mxu0
    %v356 = vadd.f32 %v184, %v355
    %v357 = vpop.f32.mrf.mxu0
    %358 = vmatprep.mubr.bf16.mxu0 0
    %359 = vmatmul.mubr.bf16.gmra.mxu0 %v280
    %v360 = vpop.f32.mrf.mxu0
    %v361 = vadd.f32 %v189, %v360
    %v362 = vpop.f32.mrf.mxu0
    %v363 = vpop.f32.mrf.mxu0
    %v364 = vadd.f32 %v194, %v363
    %v365 = vpop.f32.mrf.mxu0
    %366 = vmatprep.mubr.bf16.mxu0 0
    %367 = vmatmul.mubr.bf16.gmra.mxu0 %v283
    %v368 = vpop.f32.mrf.mxu0
    %v369 = vadd.f32 %v199, %v368
    %v370 = vpop.f32.mrf.mxu0
    %v371 = vpop.f32.mrf.mxu0
    %v372 = vadd.f32 %v204, %v371
    %v373 = vpop.f32.mrf.mxu0
    %374 = vmatprep.mubr.bf16.mxu0 0
    %375 = vmatmul.mubr.bf16.gmra.mxu0 %v286
    %v376 = vpop.f32.mrf.mxu0
    %v377 = vadd.f32 %v209, %v376
    %v378 = vpop.f32.mrf.mxu0
    %v379 = vpop.f32.mrf.mxu0
    %v380 = vadd.f32 %v214, %v379
    %v381 = vpop.f32.mrf.mxu0
    %382 = vmatprep.mubr.bf16.mxu0 0
    %383 = vmatmul.mubr.bf16.gmra.mxu0 %v289
    %v384 = vpop.f32.mrf.mxu0
    %v385 = vadd.f32 %v219, %v384
    %v386 = vpop.f32.mrf.mxu0
    %v387 = vpop.f32.mrf.mxu0
    %v388 = vadd.f32 %v224, %v387
    %v389 = vpop.f32.mrf.mxu0
    %390 = vdwg.mxu0
    %v391 = vmax.f32 %v329, 0.0
    %v392 = vmax.f32 %v332, 0.0
    %v393 = vmax.f32 %v337, 0.0
    %v394 = vmax.f32 %v340, 0.0
    %v395 = vmax.f32 %v345, 0.0
    %v396 = vmax.f32 %v348, 0.0
    %v397 = vmax.f32 %v353, 0.0
    %v398 = vmax.f32 %v356, 0.0
    %v399 = vmax.f32 %v361, 0.0
    %v400 = vmax.f32 %v364, 0.0
    %v401 = vmax.f32 %v369, 0.0
    %v402 = vmax.f32 %v372, 0.0
    %v403 = vmax.f32 %v377, 0.0
    %v404 = vmax.f32 %v380, 0.0
    %v405 = vmax.f32 %v385, 0.0
    %v406 = vmax.f32 %v388, 0.0
    %v407 = vld [vmem:[#allocation9] sm:$0xf]
    %v408 = vld [vmem:[#allocation9 + $0x4] sm:$0xf]
    %v409 = vld [vmem:[#allocation9 + $0x8] sm:$0xf]
    %v410 = vld [vmem:[#allocation9 + $0xc] sm:$0xf]
    %v411 = vld [vmem:[#allocation9 + $0x10] sm:$0xf]
    %v412 = vld [vmem:[#allocation9 + $0x14] sm:$0xf]
    %v413 = vld [vmem:[#allocation9 + $0x18] sm:$0xf]
    %v414 = vld [vmem:[#allocation9 + $0x1c] sm:$0xf]
    %v415 = vpack.c.bf16 %v392, %v391
    %v416 = vpack.c.bf16 %v394, %v393
    %v417 = vpack.c.bf16 %v396, %v395
    %v418 = vpack.c.bf16 %v398, %v397
    %v419 = vpack.c.bf16 %v400, %v399
    %v420 = vpack.c.bf16 %v402, %v401
    %v421 = vpack.c.bf16 %v404, %v403
    %v422 = vpack.c.bf16 %v406, %v405
    %v423 = vld [vmem:[#allocation11] sm:$0xff]
    %v424 = vld [vmem:[#allocation11 + $0x8] sm:$0xff]
    %v425 = vld [vmem:[#allocation11 + $0x10] sm:$0xff]
    %v426 = vld [vmem:[#allocation11 + $0x18] sm:$0xff]
    %v427 = vld [vmem:[#allocation11 + $0x20] sm:$0xff]
    %v428 = vld [vmem:[#allocation11 + $0x28] sm:$0xff]
    %v429 = vld [vmem:[#allocation11 + $0x30] sm:$0xff]
    %v430 = vld [vmem:[#allocation11 + $0x38] sm:$0xff]
    %432 = vset.pattern.permute.xlu0 0
    %433 = vperm.xlu0 %432, %v423
    %v434 = vpop.permute.xlu0 %433
    %437 = vset.pattern.permute.xlu0 0
    %438 = vperm.xlu0 %437, %v424
    %v439 = vpop.permute.xlu0 %438
    %442 = vset.pattern.permute.xlu0 0
    %443 = vperm.xlu0 %442, %v425
    %v444 = vpop.permute.xlu0 %443
    %447 = vset.pattern.permute.xlu0 0
    %448 = vperm.xlu0 %447, %v426
    %v449 = vpop.permute.xlu0 %448
    %452 = vset.pattern.permute.xlu0 0
    %453 = vperm.xlu0 %452, %v427
    %v454 = vpop.permute.xlu0 %453
    %457 = vset.pattern.permute.xlu0 0
    %458 = vperm.xlu0 %457, %v428
    %v459 = vpop.permute.xlu0 %458
    %462 = vset.pattern.permute.xlu0 0
    %463 = vperm.xlu0 %462, %v429
    %v464 = vpop.permute.xlu0 %463
    %467 = vset.pattern.permute.xlu0 0
    %468 = vperm.xlu0 %467, %v430
    %v469 = vpop.permute.xlu0 %468
    %v479 = vunpack.c.l.b16 %v407
    %v480 = vunpack.c.l.b16 %v408
    %v481 = vunpack.c.l.b16 %v409
    %v482 = vunpack.c.l.b16 %v410
    %v483 = vunpack.c.l.b16 %v411
    %v484 = vunpack.c.l.b16 %v412
    %v485 = vunpack.c.l.b16 %v413
    %v486 = vunpack.c.l.b16 %v414
    %v487 = vpack.c.b16 %v480, %v479
    %v488 = vpack.c.b16 %v482, %v481
    %v489 = vpack.c.b16 %v484, %v483
    %v490 = vpack.c.b16 %v486, %v485
    %495 = vmatprep.subr.bf16.mxu0 0
    %496 = vmatpush1.bf16.msra.mxu0 %v422
    %497 = vmatprep.subr.bf16.mxu0 0
    %498 = vmatpush1.bf16.msra.mxu0 %v421
    %499 = vmatprep.subr.bf16.mxu0 0
    %500 = vmatpush1.bf16.msra.mxu0 %v420
    %501 = vmatprep.subr.bf16.mxu0 0
    %502 = vmatpush1.bf16.msra.mxu0 %v419
    %503 = vmatprep.subr.bf16.mxu0 0
    %504 = vmatpush1.bf16.msra.mxu0 %v418
    %505 = vmatprep.subr.bf16.mxu0 0
    %506 = vmatpush1.bf16.msra.mxu0 %v417
    %507 = vmatprep.subr.bf16.mxu0 0
    %508 = vmatpush1.bf16.msra.mxu0 %v416
    %509 = vmatprep.subr.bf16.mxu0 0
    %510 = vmatpush1.bf16.msra.mxu0 %v415
    %511 = vmatprep.subr.bf16.mxu0 0
    %512 = vmatpush2.bf16.msra.mxu0 0
    %513 = vmatprep.subr.bf16.mxu0 0
    %514 = vmatpush2.bf16.msra.mxu0 0
    %515 = vmatprep.subr.bf16.mxu0 0
    %516 = vmatpush2.bf16.msra.mxu0 0
    %517 = vmatprep.subr.bf16.mxu0 0
    %518 = vmatpush2.bf16.msra.mxu0 0
    %519 = vmatprep.subr.bf16.mxu0 0
    %520 = vmatpush2.bf16.msra.mxu0 0
    %521 = vmatprep.subr.bf16.mxu0 0
    %522 = vmatpush2.bf16.msra.mxu0 0
    %523 = vmatprep.subr.bf16.mxu0 0
    %524 = vmatpush2.bf16.msra.mxu0 0
    %525 = vmatprep.subr.bf16.mxu0 0
    %526 = vmatpush2.bf16.msra.mxu0 0
    %527 = vmatprep.mubr.bf16.mxu0 0
    %528 = vmatmul.mubr.bf16.gmra.mxu0 %v487
    %v529 = vpop.f32.mrf.mxu0
    %v530 = vadd.f32 %v434, %v529
    %v531 = vpop.f32.mrf.mxu0
    %v532 = vpop.f32.mrf.mxu0
    %v533 = vadd.f32 %v439, %v532
    %v534 = vpop.f32.mrf.mxu0
    %535 = vmatprep.mubr.bf16.mxu0 0
    %536 = vmatmul.mubr.bf16.gmra.mxu0 %v488
    %v537 = vpop.f32.mrf.mxu0
    %v538 = vadd.f32 %v444, %v537
    %v539 = vpop.f32.mrf.mxu0
    %v540 = vpop.f32.mrf.mxu0
    %v541 = vadd.f32 %v449, %v540
    %v542 = vpop.f32.mrf.mxu0
    %543 = vmatprep.mubr.bf16.mxu0 0
    %544 = vmatmul.mubr.bf16.gmra.mxu0 %v489
    %v545 = vpop.f32.mrf.mxu0
    %v546 = vadd.f32 %v454, %v545
    %v547 = vpop.f32.mrf.mxu0
    %v548 = vpop.f32.mrf.mxu0
    %v549 = vadd.f32 %v459, %v548
    %v550 = vpop.f32.mrf.mxu0
    %551 = vmatprep.mubr.bf16.mxu0 0
    %552 = vmatmul.mubr.bf16.gmra.mxu0 %v490
    %v553 = vpop.f32.mrf.mxu0
    %v554 = vadd.f32 %v464, %v553
    %v555 = vpop.f32.mrf.mxu0
    %v556 = vpop.f32.mrf.mxu0
    %v557 = vadd.f32 %v469, %v556
    %v558 = vpop.f32.mrf.mxu0
    %559 = vdwg.mxu0
    %v560 = vmax.f32 %v530, 0.0
    %v561 = vmax.f32 %v533, 0.0
    %v562 = vmax.f32 %v538, 0.0
    %v563 = vmax.f32 %v541, 0.0
    %v564 = vmax.f32 %v546, 0.0
    %v565 = vmax.f32 %v549, 0.0
    %v566 = vmax.f32 %v554, 0.0
    %v567 = vmax.f32 %v557, 0.0
    %v568 = vld [vmem:[#allocation12] sm:$0xff]
    %v569 = vld [vmem:[#allocation12 + $0x8] sm:$0xff]
    %v570 = vld [vmem:[#allocation12 + $0x10] sm:$0xff]
    %v571 = vld [vmem:[#allocation12 + $0x18] sm:$0xff]
    %v572 = vld [vmem:[#allocation12 + $0x20] sm:$0xff]
    %v573 = vld [vmem:[#allocation12 + $0x28] sm:$0xff]
    %v574 = vld [vmem:[#allocation12 + $0x30] sm:$0xff]
    %v575 = vld [vmem:[#allocation12 + $0x38] sm:$0xff]
    %577 = vset.pattern.permute.xlu0 0
    %578 = vperm.xlu0 %577, %v568
    %v579 = vpop.permute.xlu0 %578
    %582 = vset.pattern.permute.xlu0 0
    %583 = vperm.xlu0 %582, %v569
    %v584 = vpop.permute.xlu0 %583
    %587 = vset.pattern.permute.xlu0 0
    %588 = vperm.xlu0 %587, %v570
    %v589 = vpop.permute.xlu0 %588
    %592 = vset.pattern.permute.xlu0 0
    %593 = vperm.xlu0 %592, %v571
    %v594 = vpop.permute.xlu0 %593
    %597 = vset.pattern.permute.xlu0 0
    %598 = vperm.xlu0 %597, %v572
    %v599 = vpop.permute.xlu0 %598
    %602 = vset.pattern.permute.xlu0 0
    %603 = vperm.xlu0 %602, %v573
    %v604 = vpop.permute.xlu0 %603
    %607 = vset.pattern.permute.xlu0 0
    %608 = vperm.xlu0 %607, %v574
    %v609 = vpop.permute.xlu0 %608
    %612 = vset.pattern.permute.xlu0 0
    %613 = vperm.xlu0 %612, %v575
    %v614 = vpop.permute.xlu0 %613
    %v616 = vmul.f32 %v560, %v579
    %v617 = vmul.f32 %v561, %v584
    %v618 = vmul.f32 %v562, %v589
    %v619 = vmul.f32 %v563, %v594
    %v620 = vmul.f32 %v564, %v599
    %v621 = vmul.f32 %v565, %v604
    %v622 = vmul.f32 %v566, %v609
    %v623 = vmul.f32 %v567, %v614
    %vm624 = vcmask 97280
    %v625 = vsel %vm624, %v616, 0.0
    %v626 = vsel %vm624, %v617, 0.0
    %v627 = vadd.f32 %v625, %v626
    %v628 = vsel %vm624, %v618, 0.0
    %v629 = vadd.f32 %v627, %v628
    %v630 = vsel %vm624, %v619, 0.0
    %v631 = vadd.f32 %v629, %v630
    %v632 = vsel %vm624, %v620, 0.0
    %v633 = vadd.f32 %v631, %v632
    %v634 = vsel %vm624, %v621, 0.0
    %v635 = vadd.f32 %v633, %v634
    %v636 = vsel %vm624, %v622, 0.0
    %v637 = vadd.f32 %v635, %v636
    %v638 = vsel %vm624, %v623, 0.0
    %v639 = vadd.f32 %v637, %v638
    %v640 = vrot.slane %v639, 4
    %v641 = vadd.f32 %v639, %v640
    %v642 = vrot.slane %v641, 2
    %v643 = vadd.f32 %v641, %v642
    %v644 = vrot.slane %v643, 1
    %v645 = vadd.f32 %v643, %v644
    %s646 = sld [smem:[#allocation2]]
    %v647 = vstv %s646
    %v648 = vadd.f32 %v645, %v647
    %v649 = vsub.f32 0.0, %v648
    %v650 = vmul.f32 %v649, 1.442695
    %v651 = vpow.pop %v650
    %v652 = vadd.f32 %v651, 1.0
    %v653 = vrcp.pop %v652
    %vm654 = vcmask 90112
    %655 = vst.msk [vmem:[#allocation14] sm:$0x1] %vm654, %v653
    // Predicated region
    $region54: #{_lambda_.1} parent=1 // pred_check
      _
    $region55: #{_lambda_.1} parent=1 // pred_check_branch
      %657 = sbr.rel (0) target = $region57
    $region56: #{_lambda_.1} parent=1 // pred_region
      %s659 = ssub.s32 16, 16
      %660 = vsyncadd [#allocation5], %s659
      %s662 = sshll.u32 [#allocation14], 4
      %s663 = int_to_ptr.vmem [resolvable:$true] %s662
      %665 = dma.vmem_to_hbm [thread:$0]  %s663, 16, %s7, [#allocation5]
    $region57: #{_lambda_.1} parent=1 // pred_fallthru
      _
    // Predicated region
    $region58: #{_lambda_.1} parent=1 // pred_check
      _
    $region59: #{_lambda_.1} parent=1 // pred_check_branch
      %667 = sbr.rel (0) target = $region61
    $region60: #{_lambda_.1} parent=1 // pred_region
      %668 = dma.done [#allocation5], 16
    $region61: #{_lambda_.1} parent=1 // pred_fallthru
      _
    %669 = vsyncpa [#allocation4], 1
    %670 = vsyncpa [#allocation7], 1
    %671 = vsyncpa [#allocation10], 1
    %672 = vsyncpa [#allocation13], 1
    %673 = vsyncpa [#allocation5], 1

</llo_original>
